<compile_context>
chip_gen: v5e
topology: v5e:2x2
jax: 0.10.0
libtpu: 0.0.40
codegen_flags: <defaults>
</compile_context>

<pallas_src>
import jax
import jax.numpy as jnp
from jax.experimental import pallas as pl
from jax.experimental.pallas import tpu as pltpu

IN_DIM = 9          # fc1 input features
IN_PAD = 16         # lane padding for the input / fc1 contraction dim
PAD = 128           # lane-padded hidden width
OUT_DIM = 2         # fc8 output width
NUM_STACKED = 7     # fc2..fc8 live in one stacked weight slab
MAX_TILE_B = 512    # rows per grid step (>=128 so MXU fill latency amortizes)

# nn.Linear shapes, PyTorch layout (out, in): fc1..fc8
LAYER_DIMS = [(9, 10)] + [(10, 10)] * 6 + [(10, 2)]


def _round_up(n, m):
    return ((n + m - 1) // m) * m


def mlp_kernel(x_ref, w1_ref, b1_ref, wr_ref, br_ref, o_ref):
    """Fused MLP forward for one batch tile.

    x_ref : (TILE_B, IN_PAD)      input rows (lanes 9..15 are zero)
    w1_ref: (IN_PAD, PAD)         fc1 weight (in, out), zero-padded
    b1_ref: (1, PAD)              fc1 bias
    wr_ref: (7, PAD, PAD)         fc2..fc8 weights (in, out), zero-padded
    br_ref: (7, 1, PAD)           fc2..fc8 biases
    o_ref : (TILE_B, OUT_DIM)     softmax probabilities
    """
    # fc1 + relu (contraction over the 16 padded input lanes).
    h = jnp.dot(x_ref[...], w1_ref[...], preferred_element_type=jnp.float32)
    h = jnp.maximum(h + b1_ref[...], 0.0)

    # fc2..fc7 + relu.  dropout1/dropout2 are identity in eval mode.
    for l in range(NUM_STACKED - 1):
        h = jnp.dot(h, wr_ref[l], preferred_element_type=jnp.float32) + br_ref[l]
        h = jnp.maximum(h, 0.0)

    # fc8 (10 -> 2), no relu.
    logits = (jnp.dot(h, wr_ref[NUM_STACKED - 1],
                      preferred_element_type=jnp.float32)
              + br_ref[NUM_STACKED - 1])

    # 2-class softmax in closed (sigmoid) form:
    #   p0 = 1 / (1 + exp(l1 - l0)),  p1 = 1 - p0.
    d = logits[:, 0:1] - logits[:, 1:2]            # (TILE_B, 1)
    p0 = 1.0 / (1.0 + jnp.exp(-d))
    lane = jax.lax.broadcasted_iota(jnp.int32, (logits.shape[0], OUT_DIM), 1)
    o_ref[...] = jnp.where(lane == 0, p0, 1.0 - p0)


def prepare_params(params):
    """One-time (outside the per-call path): transpose PyTorch (out, in) weights
    to (in, out), zero-pad, and stack fc2..fc8 into single slabs."""
    w1, b1 = params[0]
    w1_p = jnp.zeros((IN_PAD, PAD), jnp.float32).at[: w1.shape[1], : w1.shape[0]].set(w1.T)
    b1_p = jnp.zeros((1, PAD), jnp.float32).at[0, : b1.shape[0]].set(b1)

    wr = jnp.zeros((NUM_STACKED, PAD, PAD), jnp.float32)
    br = jnp.zeros((NUM_STACKED, 1, PAD), jnp.float32)
    for l, (w, b) in enumerate(params[1:]):
        wr = wr.at[l, : w.shape[1], : w.shape[0]].set(w.T)
        br = br.at[l, 0, : b.shape[0]].set(b)
    return w1_p, b1_p, wr, br


@jax.jit
def mymodule12_forward(x, w1_p, b1_p, wr, br):
    """x: (B, 9) float32.  Prepared params from prepare_params()."""
    B = x.shape[0]
    tile_b = min(MAX_TILE_B, _round_up(B, 8))
    Bp = _round_up(B, tile_b)

    # Minimal per-call prep: pad rows to a tile multiple, lanes 9 -> 16 only.
    x_p = jnp.zeros((Bp, IN_PAD), jnp.float32).at[:B, :IN_DIM].set(x)

    out = pl.pallas_call(
        mlp_kernel,
        out_shape=jax.ShapeDtypeStruct((Bp, OUT_DIM), jnp.float32),
        grid=(Bp // tile_b,),
        in_specs=[
            pl.BlockSpec((tile_b, IN_PAD), lambda i: (i, 0)),        # x tile
            pl.BlockSpec((IN_PAD, PAD), lambda i: (0, 0)),           # fc1 W (resident)
            pl.BlockSpec((1, PAD), lambda i: (0, 0)),                # fc1 b (resident)
            pl.BlockSpec((NUM_STACKED, PAD, PAD), lambda i: (0, 0, 0)),  # fc2..8 W
            pl.BlockSpec((NUM_STACKED, 1, PAD), lambda i: (0, 0, 0)),    # fc2..8 b
        ],
        out_specs=pl.BlockSpec((tile_b, OUT_DIM), lambda i: (i, 0)),
        compiler_params=pltpu.CompilerParams(
            dimension_semantics=("parallel",)),
    )(x_p, w1_p, b1_p, wr, br)

    return out[:B]


def init_params(key):
    """Deterministic xavier-uniform-like init (matching nn.Linear shapes)."""
    params = []
    for fan_out, fan_in in [(o, i) for (i, o) in LAYER_DIMS]:
        kw, kb, key = jax.random.split(key, 3)
        limit = (6.0 / (fan_in + fan_out)) ** 0.5
        w = jax.random.uniform(kw, (fan_out, fan_in), jnp.float32, -limit, limit)
        b = jax.random.uniform(kb, (fan_out,), jnp.float32, -0.1, 0.1)
        params.append((w, b))
    return params


def reference_forward(x, params):
    """Plain-JAX reference matching the PyTorch forward (dropout = identity)."""
    h = x
    for i, (w, b) in enumerate(params):
        h = h @ w.T + b
        if i < len(params) - 1:
            h = jnp.maximum(h, 0.0)
    return jax.nn.softmax(h, axis=-1)


if __name__ == "__main__":
    key = jax.random.PRNGKey(0)
    kx, kp = jax.random.split(key)

    params = init_params(kp)
    prepped = prepare_params(params)   # one-time device-side weight prep

    # Small check (single grid step).
    B = 8
    x = jax.random.normal(kx, (B, IN_DIM), dtype=jnp.float32)
    out = jax.block_until_ready(mymodule12_forward(x, *prepped))
    ref = reference_forward(x, params)
    assert out.shape == (B, OUT_DIM), out.shape
    assert jnp.allclose(out, ref, atol=1e-5, rtol=1e-4), (out, ref)
    assert jnp.allclose(jnp.sum(out, axis=-1), 1.0, atol=1e-5)

    # Larger batch exercising the batch grid (2 tiles of 512 rows + padded tail).
    B2 = 600
    x2 = jax.random.normal(jax.random.PRNGKey(1), (B2, IN_DIM), dtype=jnp.float32)
    out2 = jax.block_until_ready(mymodule12_forward(x2, *prepped))
    ref2 = reference_forward(x2, params)
    assert out2.shape == (B2, OUT_DIM), out2.shape
    assert jnp.allclose(out2, ref2, atol=1e-5, rtol=1e-4)
    assert jnp.allclose(jnp.sum(out2, axis=-1), 1.0, atol=1e-5)

    print("KERNEL_OK")
</pallas_src>

<mosaic_0001>
module attributes {stable_mosaic.version = 11 : i64} {
  func.func @mlp_kernel(%arg0: i32, %arg1: memref<8x16xf32, #tpu.memory_space<vmem>>, %arg2: memref<16x128xf32, #tpu.memory_space<vmem>>, %arg3: memref<1x128xf32, #tpu.memory_space<vmem>>, %arg4: memref<7x128x128xf32, #tpu.memory_space<vmem>>, %arg5: memref<7x1x128xf32, #tpu.memory_space<vmem>>, %arg6: memref<8x2xf32, #tpu.memory_space<vmem>>) attributes {dimension_semantics = [#tpu.dimension_semantics<parallel>], iteration_bounds = array<i64: 1>, scalar_prefetch = 0 : i64, scratch_operands = 0 : i64, tpu.core_type = #tpu.core_type<tc>, window_params = [{transform_indices = @transform_0, window_bounds = array<i64: 8, 16>}, {pipeline_mode = #tpu.pipeline_mode<synchronous>, transform_indices = @transform_1, window_bounds = array<i64: 16, 128>}, {pipeline_mode = #tpu.pipeline_mode<synchronous>, transform_indices = @transform_2, window_bounds = array<i64: 1, 128>}, {pipeline_mode = #tpu.pipeline_mode<synchronous>, transform_indices = @transform_3, window_bounds = array<i64: 7, 128, 128>}, {pipeline_mode = #tpu.pipeline_mode<synchronous>, transform_indices = @transform_4, window_bounds = array<i64: 7, 1, 128>}, {transform_indices = @transform_5, window_bounds = array<i64: 8, 2>}]} {
    %c0 = arith.constant 0 : index
    %c0_0 = arith.constant 0 : index
    %0 = vector.load %arg1[%c0, %c0_0] : memref<8x16xf32, #tpu.memory_space<vmem>>, vector<8x16xf32>
    %c0_1 = arith.constant 0 : index
    %c0_2 = arith.constant 0 : index
    %1 = vector.load %arg2[%c0_1, %c0_2] : memref<16x128xf32, #tpu.memory_space<vmem>>, vector<16x128xf32>
    %cst = arith.constant dense<0.000000e+00> : vector<8x128xf32>
    %2 = tpu.matmul %0, %1, %cst {dimension_numbers = #tpu.dot_dimension_numbers<[1], [0], [0], [1], [0, 0, 1, 1], [], []>} : vector<8x16xf32>, vector<16x128xf32>, vector<8x128xf32> -> vector<8x128xf32>
    %c0_3 = arith.constant 0 : index
    %c0_4 = arith.constant 0 : index
    %3 = vector.load %arg3[%c0_3, %c0_4] : memref<1x128xf32, #tpu.memory_space<vmem>>, vector<1x128xf32>
    %4 = vector.broadcast %3 : vector<1x128xf32> to vector<8x128xf32>
    %5 = arith.addf %2, %4 : vector<8x128xf32>
    %cst_5 = arith.constant 0.000000e+00 : f32
    %6 = vector.broadcast %cst_5 : f32 to vector<8x128xf32>
    %7 = arith.maximumf %5, %6 : vector<8x128xf32>
    %c0_6 = arith.constant 0 : index
    %c0_7 = arith.constant 0 : index
    %c0_8 = arith.constant 0 : index
    %8 = vector.load %arg4[%c0_6, %c0_7, %c0_8] : memref<7x128x128xf32, #tpu.memory_space<vmem>>, vector<1x128x128xf32>
    %9 = vector.shape_cast %8 : vector<1x128x128xf32> to vector<128x128xf32>
    %cst_9 = arith.constant dense<0.000000e+00> : vector<8x128xf32>
    %10 = tpu.matmul %7, %9, %cst_9 {dimension_numbers = #tpu.dot_dimension_numbers<[1], [0], [0], [1], [0, 0, 1, 1], [], []>} : vector<8x128xf32>, vector<128x128xf32>, vector<8x128xf32> -> vector<8x128xf32>
    %c0_10 = arith.constant 0 : index
    %c0_11 = arith.constant 0 : index
    %c0_12 = arith.constant 0 : index
    %11 = vector.load %arg5[%c0_10, %c0_11, %c0_12] : memref<7x1x128xf32, #tpu.memory_space<vmem>>, vector<1x1x128xf32>
    %12 = vector.shape_cast %11 : vector<1x1x128xf32> to vector<1x128xf32>
    %13 = vector.broadcast %12 : vector<1x128xf32> to vector<8x128xf32>
    %14 = arith.addf %10, %13 : vector<8x128xf32>
    %cst_13 = arith.constant 0.000000e+00 : f32
    %15 = vector.broadcast %cst_13 : f32 to vector<8x128xf32>
    %16 = arith.maximumf %14, %15 : vector<8x128xf32>
    %c1 = arith.constant 1 : index
    %c0_14 = arith.constant 0 : index
    %c0_15 = arith.constant 0 : index
    %17 = vector.load %arg4[%c1, %c0_14, %c0_15] : memref<7x128x128xf32, #tpu.memory_space<vmem>>, vector<1x128x128xf32>
    %18 = vector.shape_cast %17 : vector<1x128x128xf32> to vector<128x128xf32>
    %cst_16 = arith.constant dense<0.000000e+00> : vector<8x128xf32>
    %19 = tpu.matmul %16, %18, %cst_16 {dimension_numbers = #tpu.dot_dimension_numbers<[1], [0], [0], [1], [0, 0, 1, 1], [], []>} : vector<8x128xf32>, vector<128x128xf32>, vector<8x128xf32> -> vector<8x128xf32>
    %c1_17 = arith.constant 1 : index
    %c0_18 = arith.constant 0 : index
    %c0_19 = arith.constant 0 : index
    %20 = vector.load %arg5[%c1_17, %c0_18, %c0_19] : memref<7x1x128xf32, #tpu.memory_space<vmem>>, vector<1x1x128xf32>
    %21 = vector.shape_cast %20 : vector<1x1x128xf32> to vector<1x128xf32>
    %22 = vector.broadcast %21 : vector<1x128xf32> to vector<8x128xf32>
    %23 = arith.addf %19, %22 : vector<8x128xf32>
    %cst_20 = arith.constant 0.000000e+00 : f32
    %24 = vector.broadcast %cst_20 : f32 to vector<8x128xf32>
    %25 = arith.maximumf %23, %24 : vector<8x128xf32>
    %c2 = arith.constant 2 : index
    %c0_21 = arith.constant 0 : index
    %c0_22 = arith.constant 0 : index
    %26 = vector.load %arg4[%c2, %c0_21, %c0_22] : memref<7x128x128xf32, #tpu.memory_space<vmem>>, vector<1x128x128xf32>
    %27 = vector.shape_cast %26 : vector<1x128x128xf32> to vector<128x128xf32>
    %cst_23 = arith.constant dense<0.000000e+00> : vector<8x128xf32>
    %28 = tpu.matmul %25, %27, %cst_23 {dimension_numbers = #tpu.dot_dimension_numbers<[1], [0], [0], [1], [0, 0, 1, 1], [], []>} : vector<8x128xf32>, vector<128x128xf32>, vector<8x128xf32> -> vector<8x128xf32>
    %c2_24 = arith.constant 2 : index
    %c0_25 = arith.constant 0 : index
    %c0_26 = arith.constant 0 : index
    %29 = vector.load %arg5[%c2_24, %c0_25, %c0_26] : memref<7x1x128xf32, #tpu.memory_space<vmem>>, vector<1x1x128xf32>
    %30 = vector.shape_cast %29 : vector<1x1x128xf32> to vector<1x128xf32>
    %31 = vector.broadcast %30 : vector<1x128xf32> to vector<8x128xf32>
    %32 = arith.addf %28, %31 : vector<8x128xf32>
    %cst_27 = arith.constant 0.000000e+00 : f32
    %33 = vector.broadcast %cst_27 : f32 to vector<8x128xf32>
    %34 = arith.maximumf %32, %33 : vector<8x128xf32>
    %c3 = arith.constant 3 : index
    %c0_28 = arith.constant 0 : index
    %c0_29 = arith.constant 0 : index
    %35 = vector.load %arg4[%c3, %c0_28, %c0_29] : memref<7x128x128xf32, #tpu.memory_space<vmem>>, vector<1x128x128xf32>
    %36 = vector.shape_cast %35 : vector<1x128x128xf32> to vector<128x128xf32>
    %cst_30 = arith.constant dense<0.000000e+00> : vector<8x128xf32>
    %37 = tpu.matmul %34, %36, %cst_30 {dimension_numbers = #tpu.dot_dimension_numbers<[1], [0], [0], [1], [0, 0, 1, 1], [], []>} : vector<8x128xf32>, vector<128x128xf32>, vector<8x128xf32> -> vector<8x128xf32>
    %c3_31 = arith.constant 3 : index
    %c0_32 = arith.constant 0 : index
    %c0_33 = arith.constant 0 : index
    %38 = vector.load %arg5[%c3_31, %c0_32, %c0_33] : memref<7x1x128xf32, #tpu.memory_space<vmem>>, vector<1x1x128xf32>
    %39 = vector.shape_cast %38 : vector<1x1x128xf32> to vector<1x128xf32>
    %40 = vector.broadcast %39 : vector<1x128xf32> to vector<8x128xf32>
    %41 = arith.addf %37, %40 : vector<8x128xf32>
    %cst_34 = arith.constant 0.000000e+00 : f32
    %42 = vector.broadcast %cst_34 : f32 to vector<8x128xf32>
    %43 = arith.maximumf %41, %42 : vector<8x128xf32>
    %c4 = arith.constant 4 : index
    %c0_35 = arith.constant 0 : index
    %c0_36 = arith.constant 0 : index
    %44 = vector.load %arg4[%c4, %c0_35, %c0_36] : memref<7x128x128xf32, #tpu.memory_space<vmem>>, vector<1x128x128xf32>
    %45 = vector.shape_cast %44 : vector<1x128x128xf32> to vector<128x128xf32>
    %cst_37 = arith.constant dense<0.000000e+00> : vector<8x128xf32>
    %46 = tpu.matmul %43, %45, %cst_37 {dimension_numbers = #tpu.dot_dimension_numbers<[1], [0], [0], [1], [0, 0, 1, 1], [], []>} : vector<8x128xf32>, vector<128x128xf32>, vector<8x128xf32> -> vector<8x128xf32>
    %c4_38 = arith.constant 4 : index
    %c0_39 = arith.constant 0 : index
    %c0_40 = arith.constant 0 : index
    %47 = vector.load %arg5[%c4_38, %c0_39, %c0_40] : memref<7x1x128xf32, #tpu.memory_space<vmem>>, vector<1x1x128xf32>
    %48 = vector.shape_cast %47 : vector<1x1x128xf32> to vector<1x128xf32>
    %49 = vector.broadcast %48 : vector<1x128xf32> to vector<8x128xf32>
    %50 = arith.addf %46, %49 : vector<8x128xf32>
    %cst_41 = arith.constant 0.000000e+00 : f32
    %51 = vector.broadcast %cst_41 : f32 to vector<8x128xf32>
    %52 = arith.maximumf %50, %51 : vector<8x128xf32>
    %c5 = arith.constant 5 : index
    %c0_42 = arith.constant 0 : index
    %c0_43 = arith.constant 0 : index
    %53 = vector.load %arg4[%c5, %c0_42, %c0_43] : memref<7x128x128xf32, #tpu.memory_space<vmem>>, vector<1x128x128xf32>
    %54 = vector.shape_cast %53 : vector<1x128x128xf32> to vector<128x128xf32>
    %cst_44 = arith.constant dense<0.000000e+00> : vector<8x128xf32>
    %55 = tpu.matmul %52, %54, %cst_44 {dimension_numbers = #tpu.dot_dimension_numbers<[1], [0], [0], [1], [0, 0, 1, 1], [], []>} : vector<8x128xf32>, vector<128x128xf32>, vector<8x128xf32> -> vector<8x128xf32>
    %c5_45 = arith.constant 5 : index
    %c0_46 = arith.constant 0 : index
    %c0_47 = arith.constant 0 : index
    %56 = vector.load %arg5[%c5_45, %c0_46, %c0_47] : memref<7x1x128xf32, #tpu.memory_space<vmem>>, vector<1x1x128xf32>
    %57 = vector.shape_cast %56 : vector<1x1x128xf32> to vector<1x128xf32>
    %58 = vector.broadcast %57 : vector<1x128xf32> to vector<8x128xf32>
    %59 = arith.addf %55, %58 : vector<8x128xf32>
    %cst_48 = arith.constant 0.000000e+00 : f32
    %60 = vector.broadcast %cst_48 : f32 to vector<8x128xf32>
    %61 = arith.maximumf %59, %60 : vector<8x128xf32>
    %c6 = arith.constant 6 : index
    %c0_49 = arith.constant 0 : index
    %c0_50 = arith.constant 0 : index
    %62 = vector.load %arg4[%c6, %c0_49, %c0_50] : memref<7x128x128xf32, #tpu.memory_space<vmem>>, vector<1x128x128xf32>
    %63 = vector.shape_cast %62 : vector<1x128x128xf32> to vector<128x128xf32>
    %cst_51 = arith.constant dense<0.000000e+00> : vector<8x128xf32>
    %64 = tpu.matmul %61, %63, %cst_51 {dimension_numbers = #tpu.dot_dimension_numbers<[1], [0], [0], [1], [0, 0, 1, 1], [], []>} : vector<8x128xf32>, vector<128x128xf32>, vector<8x128xf32> -> vector<8x128xf32>
    %c6_52 = arith.constant 6 : index
    %c0_53 = arith.constant 0 : index
    %c0_54 = arith.constant 0 : index
    %65 = vector.load %arg5[%c6_52, %c0_53, %c0_54] : memref<7x1x128xf32, #tpu.memory_space<vmem>>, vector<1x1x128xf32>
    %66 = vector.shape_cast %65 : vector<1x1x128xf32> to vector<1x128xf32>
    %67 = vector.broadcast %66 : vector<1x128xf32> to vector<8x128xf32>
    %68 = arith.addf %64, %67 : vector<8x128xf32>
    %69 = vector.extract_strided_slice %68 {offsets = [0, 0], sizes = [8, 1], strides = [1, 1]} : vector<8x128xf32> to vector<8x1xf32>
    %70 = vector.extract_strided_slice %68 {offsets = [0, 1], sizes = [8, 1], strides = [1, 1]} : vector<8x128xf32> to vector<8x1xf32>
    %71 = arith.subf %69, %70 : vector<8x1xf32>
    %cst_55 = arith.constant 0.000000e+00 : f32
    %72 = vector.broadcast %cst_55 : f32 to vector<8x1xf32>
    %73 = arith.subf %72, %71 : vector<8x1xf32>
    %74 = math.exp %73 : vector<8x1xf32>
    %cst_56 = arith.constant 1.000000e+00 : f32
    %75 = vector.broadcast %cst_56 : f32 to vector<8x1xf32>
    %76 = arith.addf %75, %74 : vector<8x1xf32>
    %cst_57 = arith.constant 1.000000e+00 : f32
    %77 = vector.broadcast %cst_57 : f32 to vector<8x1xf32>
    %78 = arith.divf %77, %76 : vector<8x1xf32>
    %79 = tpu.iota {dimensions = array<i32: 1>} : vector<8x2xi32>
    %c0_i32 = arith.constant 0 : i32
    %80 = vector.broadcast %c0_i32 : i32 to vector<8x2xi32>
    %81 = arith.cmpi eq, %79, %80 : vector<8x2xi32>
    %cst_58 = arith.constant 1.000000e+00 : f32
    %82 = vector.broadcast %cst_58 : f32 to vector<8x1xf32>
    %83 = arith.subf %82, %78 : vector<8x1xf32>
    %84 = vector.shape_cast %78 : vector<8x1xf32> to vector<8x1xf32>
    %85 = vector.broadcast %84 : vector<8x1xf32> to vector<8x2xf32>
    %86 = vector.shape_cast %83 : vector<8x1xf32> to vector<8x1xf32>
    %87 = vector.broadcast %86 : vector<8x1xf32> to vector<8x2xf32>
    %88 = arith.select %81, %85, %87 : vector<8x2xi1>, vector<8x2xf32>
    %c0_59 = arith.constant 0 : index
    %c0_60 = arith.constant 0 : index
    %89 = vector.load %arg6[%c0_59, %c0_60] : memref<8x2xf32, #tpu.memory_space<vmem>>, vector<8x2xf32>
    tpu.vector_store %arg6[%c0_59, %c0_60], %88 {strides = array<i32>} : memref<8x2xf32, #tpu.memory_space<vmem>>, vector<8x2xf32>,
    return
  }
  func.func @transform_0(%arg0: i32) -> (i32, i32) {
    %c0_i32 = arith.constant 0 : i32
    %c0_i32_0 = arith.constant 0 : i32
    return %arg0, %c0_i32 : i32, i32
  }
  func.func @transform_1(%arg0: i32) -> (i32, i32) {
    %c0_i32 = arith.constant 0 : i32
    %c0_i32_0 = arith.constant 0 : i32
    %c0_i32_1 = arith.constant 0 : i32
    return %c0_i32, %c0_i32_0 : i32, i32
  }
  func.func @transform_2(%arg0: i32) -> (i32, i32) {
    %c0_i32 = arith.constant 0 : i32
    %c0_i32_0 = arith.constant 0 : i32
    %c0_i32_1 = arith.constant 0 : i32
    return %c0_i32, %c0_i32_0 : i32, i32
  }
  func.func @transform_3(%arg0: i32) -> (i32, i32, i32) {
    %c0_i32 = arith.constant 0 : i32
    %c0_i32_0 = arith.constant 0 : i32
    %c0_i32_1 = arith.constant 0 : i32
    %c0_i32_2 = arith.constant 0 : i32
    return %c0_i32, %c0_i32_0, %c0_i32_1 : i32, i32, i32
  }
  func.func @transform_4(%arg0: i32) -> (i32, i32, i32) {
    %c0_i32 = arith.constant 0 : i32
    %c0_i32_0 = arith.constant 0 : i32
    %c0_i32_1 = arith.constant 0 : i32
    %c0_i32_2 = arith.constant 0 : i32
    return %c0_i32, %c0_i32_0, %c0_i32_1 : i32, i32, i32
  }
  func.func @transform_5(%arg0: i32) -> (i32, i32) {
    %c0_i32 = arith.constant 0 : i32
    %c0_i32_0 = arith.constant 0 : i32
    return %arg0, %c0_i32 : i32, i32
  }
}

</mosaic_0001>

<llo_original>
// kernel: mymodule12_forward.1
$region0: #{mymodule12_forward.1}
  #allocation0 [shape = 'u32[]', space=smem, size = 0x4, offset = 0x4, fixed_abs, tag = 'smem constant byte address 0x4 - core index']
  #allocation1 [shape = 'u32[72,128]{1,0:T(1,128)}', space=vmem, size = 0x9000, scoped, tag = 'internal scratch']
  %s0 = inlined_call_operand.vmem [shape: f32[8,16], index: 0, kind: input, shape index: {}]
  %s1 = inlined_call_operand.vmem [shape: f32[16,128], index: 1, kind: input, shape index: {}]
  %s2 = inlined_call_operand.vmem [shape: f32[1,128], index: 2, kind: input, shape index: {}]
  %s3 = inlined_call_operand.hbm [shape: f32[7,128,128], index: 3, kind: input, shape index: {}]
  %s4 = inlined_call_operand.vmem [shape: f32[7,1,128], index: 4, kind: input, shape index: {}]
  %s5 = inlined_call_operand.vmem [shape: f32[8,2], index: 5, kind: output, shape index: {}]
  %s6 = sld [smem:[#allocation0]]
  $region34: #{mymodule12_forward.1} parent=0
    _
  %s8 = ssub.s32 1, %s6
  %s9 = scalar_select 0, %s8, %s6
  $region1: #{mymodule12_forward.1} parent=0
    #allocation2 [shape = 'u8[458752]{0}', space=vmem, size = 0x70000, scoped, tag = 'input window, operand 3, single buffered']
    #allocation3 [shape = 's32[1]{0}', space=sflag, size = 0x4, scoped, tag = 'scoped memory for mymodule12_forward.1']
    %10 = vsyncpa [#allocation3], 0
    // Predicated region
    $region2: #{mymodule12_forward.1} parent=1 // pred_check
      _
    $region3: #{mymodule12_forward.1} parent=1 // pred_check_branch
      %12 = sbr.rel (0) target = $region5
    $region4: #{mymodule12_forward.1} parent=1 // pred_region
      _
    $region5: #{mymodule12_forward.1} parent=1 // pred_fallthru
      _
    // Predicated region
    $region6: #{mymodule12_forward.1} parent=1 // pred_check
      _
    $region7: #{mymodule12_forward.1} parent=1 // pred_check_branch
      %14 = sbr.rel (0) target = $region9
    $region8: #{mymodule12_forward.1} parent=1 // pred_region
      _
    $region9: #{mymodule12_forward.1} parent=1 // pred_fallthru
      _
    // Predicated region
    $region10: #{mymodule12_forward.1} parent=1 // pred_check
      _
    $region11: #{mymodule12_forward.1} parent=1 // pred_check_branch
      %16 = sbr.rel (0) target = $region13
    $region12: #{mymodule12_forward.1} parent=1 // pred_region
      _
    $region13: #{mymodule12_forward.1} parent=1 // pred_fallthru
      _
    // Predicated region
    $region14: #{mymodule12_forward.1} parent=1 // pred_check
      _
    $region15: #{mymodule12_forward.1} parent=1 // pred_check_branch
      %18 = sbr.rel (0) target = $region17
    $region16: #{mymodule12_forward.1} parent=1 // pred_region
      %20 = vsyncadd [#allocation3], 0
      %s21 = sshll.u32 %s3, 4
      %s22 = int_to_ptr.hbm [resolvable:$true] %s21
      %s23 = sshll.u32 [#allocation2], 4
      %s24 = int_to_ptr.vmem [resolvable:$true] %s23
      %29 = dma.hbm_to_vmem [thread:$0]  %s22, 14336, %s24, [#allocation3], 128, 128, 8
    $region17: #{mymodule12_forward.1} parent=1 // pred_fallthru
      _
    // Predicated region
    $region18: #{mymodule12_forward.1} parent=1 // pred_check
      _
    $region19: #{mymodule12_forward.1} parent=1 // pred_check_branch
      %31 = sbr.rel (0) target = $region21
    $region20: #{mymodule12_forward.1} parent=1 // pred_region
      _
    $region21: #{mymodule12_forward.1} parent=1 // pred_fallthru
      _
    // Predicated region
    $region22: #{mymodule12_forward.1} parent=1 // pred_check
      _
    $region23: #{mymodule12_forward.1} parent=1 // pred_check_branch
      %33 = sbr.rel (0) target = $region25
    $region24: #{mymodule12_forward.1} parent=1 // pred_region
      %35 = dma.done [#allocation3], 14336
    $region25: #{mymodule12_forward.1} parent=1 // pred_fallthru
      _
    %v36 = vld [vmem:[%s0] sm:$0xff]
    %v37 = vld [vmem:[%s1] sm:$0xff]
    %v38 = vld [vmem:[%s1 + $0x8] sm:$0xff]
    %v39 = vld [vmem:[%s2] sm:$0x1]
    %v41 = vperm.slane %v39, 0
    %vm43 = vcmask 130048
    %v45 = vsel %vm43, %v36, 0
    %47 = vmatpush.msra.mxu0 0.0
    %48 = vmatpush.msra.mxu0 0.0
    %49 = vmatpush.msra.mxu0 0.0
    %50 = vmatpush.msra.mxu0 0.0
    %51 = vmatpush.msra.mxu0 0.0
    %52 = vmatpush.msra.mxu0 0.0
    %53 = vmatpush.msra.mxu0 0.0
    %54 = vmatpush.msra.mxu0 0.0
    %55 = vmatpush.msra.mxu0 0.0
    %56 = vmatpush.msra.mxu0 0.0
    %57 = vmatpush.msra.mxu0 0.0
    %58 = vmatpush.msra.mxu0 0.0
    %59 = vmatpush.msra.mxu0 0.0
    %60 = vmatpush.msra.mxu0 0.0
    %61 = vmatpush.msra.mxu0 %v38
    %62 = vmatpush.msra.mxu0 %v37
    %63 = vmatmul.f32.gmra.mxu0 %v45
    %v64 = vpop.f32.mrf.mxu0
    %v65 = vadd.f32 %v41, %v64
    %66 = vdwg.mxu0
    %v67 = vmax.f32 %v65, 0.0
    %v68 = vld [vmem:[#allocation2] sm:$0xff]
    %v69 = vld [vmem:[#allocation2 + $0x8] sm:$0xff]
    %v70 = vld [vmem:[#allocation2 + $0x10] sm:$0xff]
    %v71 = vld [vmem:[#allocation2 + $0x18] sm:$0xff]
    %v72 = vld [vmem:[#allocation2 + $0x20] sm:$0xff]
    %v73 = vld [vmem:[#allocation2 + $0x28] sm:$0xff]
    %v74 = vld [vmem:[#allocation2 + $0x30] sm:$0xff]
    %v75 = vld [vmem:[#allocation2 + $0x38] sm:$0xff]
    %v76 = vld [vmem:[#allocation2 + $0x40] sm:$0xff]
    %v77 = vld [vmem:[#allocation2 + $0x48] sm:$0xff]
    %v78 = vld [vmem:[#allocation2 + $0x50] sm:$0xff]
    %v79 = vld [vmem:[#allocation2 + $0x58] sm:$0xff]
    %v80 = vld [vmem:[#allocation2 + $0x60] sm:$0xff]
    %v81 = vld [vmem:[#allocation2 + $0x68] sm:$0xff]
    %v82 = vld [vmem:[#allocation2 + $0x70] sm:$0xff]
    %v83 = vld [vmem:[#allocation2 + $0x78] sm:$0xff]
    %v84 = vld [vmem:[%s4] sm:$0x1]
    %v86 = vperm.slane %v84, 0
    %88 = vmatpush.msra.mxu0 %v83
    %89 = vmatpush.msra.mxu0 %v82
    %90 = vmatpush.msra.mxu0 %v81
    %91 = vmatpush.msra.mxu0 %v80
    %92 = vmatpush.msra.mxu0 %v79
    %93 = vmatpush.msra.mxu0 %v78
    %94 = vmatpush.msra.mxu0 %v77
    %95 = vmatpush.msra.mxu0 %v76
    %96 = vmatpush.msra.mxu0 %v75
    %97 = vmatpush.msra.mxu0 %v74
    %98 = vmatpush.msra.mxu0 %v73
    %99 = vmatpush.msra.mxu0 %v72
    %100 = vmatpush.msra.mxu0 %v71
    %101 = vmatpush.msra.mxu0 %v70
    %102 = vmatpush.msra.mxu0 %v69
    %103 = vmatpush.msra.mxu0 %v68
    %104 = vmatmul.f32.gmra.mxu0 %v67
    %v105 = vpop.f32.mrf.mxu0
    %v106 = vadd.f32 %v86, %v105
    %107 = vdwg.mxu0
    %v108 = vmax.f32 %v106, 0.0
    %s109 = scalar_lea.vmem [#allocation2], 128
    %v110 = vld [vmem:[%s109] sm:$0xff]
    %v111 = vld [vmem:[%s109 + $0x8] sm:$0xff]
    %v112 = vld [vmem:[%s109 + $0x10] sm:$0xff]
    %v113 = vld [vmem:[%s109 + $0x18] sm:$0xff]
    %v114 = vld [vmem:[%s109 + $0x20] sm:$0xff]
    %v115 = vld [vmem:[%s109 + $0x28] sm:$0xff]
    %v116 = vld [vmem:[%s109 + $0x30] sm:$0xff]
    %v117 = vld [vmem:[%s109 + $0x38] sm:$0xff]
    %v118 = vld [vmem:[%s109 + $0x40] sm:$0xff]
    %v119 = vld [vmem:[%s109 + $0x48] sm:$0xff]
    %v120 = vld [vmem:[%s109 + $0x50] sm:$0xff]
    %v121 = vld [vmem:[%s109 + $0x58] sm:$0xff]
    %v122 = vld [vmem:[%s109 + $0x60] sm:$0xff]
    %v123 = vld [vmem:[%s109 + $0x68] sm:$0xff]
    %v124 = vld [vmem:[%s109 + $0x70] sm:$0xff]
    %v125 = vld [vmem:[%s109 + $0x78] sm:$0xff]
    %s126 = scalar_lea.vmem %s4, 1
    %v127 = vld [vmem:[%s126] sm:$0x1]
    %v129 = vperm.slane %v127, 0
    %131 = vmatpush.msra.mxu0 %v125
    %132 = vmatpush.msra.mxu0 %v124
    %133 = vmatpush.msra.mxu0 %v123
    %134 = vmatpush.msra.mxu0 %v122
    %135 = vmatpush.msra.mxu0 %v121
    %136 = vmatpush.msra.mxu0 %v120
    %137 = vmatpush.msra.mxu0 %v119
    %138 = vmatpush.msra.mxu0 %v118
    %139 = vmatpush.msra.mxu0 %v117
    %140 = vmatpush.msra.mxu0 %v116
    %141 = vmatpush.msra.mxu0 %v115
    %142 = vmatpush.msra.mxu0 %v114
    %143 = vmatpush.msra.mxu0 %v113
    %144 = vmatpush.msra.mxu0 %v112
    %145 = vmatpush.msra.mxu0 %v111
    %146 = vmatpush.msra.mxu0 %v110
    %147 = vmatmul.f32.gmra.mxu0 %v108
    %v148 = vpop.f32.mrf.mxu0
    %v149 = vadd.f32 %v129, %v148
    %150 = vdwg.mxu0
    %v151 = vmax.f32 %v149, 0.0
    %s152 = scalar_lea.vmem [#allocation2], 256
    %v153 = vld [vmem:[%s152] sm:$0xff]
    %v154 = vld [vmem:[%s152 + $0x8] sm:$0xff]
    %v155 = vld [vmem:[%s152 + $0x10] sm:$0xff]
    %v156 = vld [vmem:[%s152 + $0x18] sm:$0xff]
    %v157 = vld [vmem:[%s152 + $0x20] sm:$0xff]
    %v158 = vld [vmem:[%s152 + $0x28] sm:$0xff]
    %v159 = vld [vmem:[%s152 + $0x30] sm:$0xff]
    %v160 = vld [vmem:[%s152 + $0x38] sm:$0xff]
    %v161 = vld [vmem:[%s152 + $0x40] sm:$0xff]
    %v162 = vld [vmem:[%s152 + $0x48] sm:$0xff]
    %v163 = vld [vmem:[%s152 + $0x50] sm:$0xff]
    %v164 = vld [vmem:[%s152 + $0x58] sm:$0xff]
    %v165 = vld [vmem:[%s152 + $0x60] sm:$0xff]
    %v166 = vld [vmem:[%s152 + $0x68] sm:$0xff]
    %v167 = vld [vmem:[%s152 + $0x70] sm:$0xff]
    %v168 = vld [vmem:[%s152 + $0x78] sm:$0xff]
    %s169 = scalar_lea.vmem %s4, 2
    %v170 = vld [vmem:[%s169] sm:$0x1]
    %v172 = vperm.slane %v170, 0
    %174 = vmatpush.msra.mxu0 %v168
    %175 = vmatpush.msra.mxu0 %v167
    %176 = vmatpush.msra.mxu0 %v166
    %177 = vmatpush.msra.mxu0 %v165
    %178 = vmatpush.msra.mxu0 %v164
    %179 = vmatpush.msra.mxu0 %v163
    %180 = vmatpush.msra.mxu0 %v162
    %181 = vmatpush.msra.mxu0 %v161
    %182 = vmatpush.msra.mxu0 %v160
    %183 = vmatpush.msra.mxu0 %v159
    %184 = vmatpush.msra.mxu0 %v158
    %185 = vmatpush.msra.mxu0 %v157
    %186 = vmatpush.msra.mxu0 %v156
    %187 = vmatpush.msra.mxu0 %v155
    %188 = vmatpush.msra.mxu0 %v154
    %189 = vmatpush.msra.mxu0 %v153
    %190 = vmatmul.f32.gmra.mxu0 %v151
    %v191 = vpop.f32.mrf.mxu0
    %v192 = vadd.f32 %v172, %v191
    %193 = vdwg.mxu0
    %v194 = vmax.f32 %v192, 0.0
    %s195 = scalar_lea.vmem [#allocation2], 384
    %v196 = vld [vmem:[%s195] sm:$0xff]
    %v197 = vld [vmem:[%s195 + $0x8] sm:$0xff]
    %v198 = vld [vmem:[%s195 + $0x10] sm:$0xff]
    %v199 = vld [vmem:[%s195 + $0x18] sm:$0xff]
    %v200 = vld [vmem:[%s195 + $0x20] sm:$0xff]
    %v201 = vld [vmem:[%s195 + $0x28] sm:$0xff]
    %v202 = vld [vmem:[%s195 + $0x30] sm:$0xff]
    %v203 = vld [vmem:[%s195 + $0x38] sm:$0xff]
    %v204 = vld [vmem:[%s195 + $0x40] sm:$0xff]
    %v205 = vld [vmem:[%s195 + $0x48] sm:$0xff]
    %v206 = vld [vmem:[%s195 + $0x50] sm:$0xff]
    %v207 = vld [vmem:[%s195 + $0x58] sm:$0xff]
    %v208 = vld [vmem:[%s195 + $0x60] sm:$0xff]
    %v209 = vld [vmem:[%s195 + $0x68] sm:$0xff]
    %v210 = vld [vmem:[%s195 + $0x70] sm:$0xff]
    %v211 = vld [vmem:[%s195 + $0x78] sm:$0xff]
    %s212 = scalar_lea.vmem %s4, 3
    %v213 = vld [vmem:[%s212] sm:$0x1]
    %v215 = vperm.slane %v213, 0
    %217 = vmatpush.msra.mxu0 %v211
    %218 = vmatpush.msra.mxu0 %v210
    %219 = vmatpush.msra.mxu0 %v209
    %220 = vmatpush.msra.mxu0 %v208
    %221 = vmatpush.msra.mxu0 %v207
    %222 = vmatpush.msra.mxu0 %v206
    %223 = vmatpush.msra.mxu0 %v205
    %224 = vmatpush.msra.mxu0 %v204
    %225 = vmatpush.msra.mxu0 %v203
    %226 = vmatpush.msra.mxu0 %v202
    %227 = vmatpush.msra.mxu0 %v201
    %228 = vmatpush.msra.mxu0 %v200
    %229 = vmatpush.msra.mxu0 %v199
    %230 = vmatpush.msra.mxu0 %v198
    %231 = vmatpush.msra.mxu0 %v197
    %232 = vmatpush.msra.mxu0 %v196
    %233 = vmatmul.f32.gmra.mxu0 %v194
    %v234 = vpop.f32.mrf.mxu0
    %v235 = vadd.f32 %v215, %v234
    %236 = vdwg.mxu0
    %v237 = vmax.f32 %v235, 0.0
    %s238 = scalar_lea.vmem [#allocation2], 512
    %v239 = vld [vmem:[%s238] sm:$0xff]
    %v240 = vld [vmem:[%s238 + $0x8] sm:$0xff]
    %v241 = vld [vmem:[%s238 + $0x10] sm:$0xff]
    %v242 = vld [vmem:[%s238 + $0x18] sm:$0xff]
    %v243 = vld [vmem:[%s238 + $0x20] sm:$0xff]
    %v244 = vld [vmem:[%s238 + $0x28] sm:$0xff]
    %v245 = vld [vmem:[%s238 + $0x30] sm:$0xff]
    %v246 = vld [vmem:[%s238 + $0x38] sm:$0xff]
    %v247 = vld [vmem:[%s238 + $0x40] sm:$0xff]
    %v248 = vld [vmem:[%s238 + $0x48] sm:$0xff]
    %v249 = vld [vmem:[%s238 + $0x50] sm:$0xff]
    %v250 = vld [vmem:[%s238 + $0x58] sm:$0xff]
    %v251 = vld [vmem:[%s238 + $0x60] sm:$0xff]
    %v252 = vld [vmem:[%s238 + $0x68] sm:$0xff]
    %v253 = vld [vmem:[%s238 + $0x70] sm:$0xff]
    %v254 = vld [vmem:[%s238 + $0x78] sm:$0xff]
    %s255 = scalar_lea.vmem %s4, 4
    %v256 = vld [vmem:[%s255] sm:$0x1]
    %v258 = vperm.slane %v256, 0
    %260 = vmatpush.msra.mxu0 %v254
    %261 = vmatpush.msra.mxu0 %v253
    %262 = vmatpush.msra.mxu0 %v252
    %263 = vmatpush.msra.mxu0 %v251
    %264 = vmatpush.msra.mxu0 %v250
    %265 = vmatpush.msra.mxu0 %v249
    %266 = vmatpush.msra.mxu0 %v248
    %267 = vmatpush.msra.mxu0 %v247
    %268 = vmatpush.msra.mxu0 %v246
    %269 = vmatpush.msra.mxu0 %v245
    %270 = vmatpush.msra.mxu0 %v244
    %271 = vmatpush.msra.mxu0 %v243
    %272 = vmatpush.msra.mxu0 %v242
    %273 = vmatpush.msra.mxu0 %v241
    %274 = vmatpush.msra.mxu0 %v240
    %275 = vmatpush.msra.mxu0 %v239
    %276 = vmatmul.f32.gmra.mxu0 %v237
    %v277 = vpop.f32.mrf.mxu0
    %v278 = vadd.f32 %v258, %v277
    %279 = vdwg.mxu0
    %v280 = vmax.f32 %v278, 0.0
    %s281 = scalar_lea.vmem [#allocation2], 640
    %v282 = vld [vmem:[%s281] sm:$0xff]
    %v283 = vld [vmem:[%s281 + $0x8] sm:$0xff]
    %v284 = vld [vmem:[%s281 + $0x10] sm:$0xff]
    %v285 = vld [vmem:[%s281 + $0x18] sm:$0xff]
    %v286 = vld [vmem:[%s281 + $0x20] sm:$0xff]
    %v287 = vld [vmem:[%s281 + $0x28] sm:$0xff]
    %v288 = vld [vmem:[%s281 + $0x30] sm:$0xff]
    %v289 = vld [vmem:[%s281 + $0x38] sm:$0xff]
    %v290 = vld [vmem:[%s281 + $0x40] sm:$0xff]
    %v291 = vld [vmem:[%s281 + $0x48] sm:$0xff]
    %v292 = vld [vmem:[%s281 + $0x50] sm:$0xff]
    %v293 = vld [vmem:[%s281 + $0x58] sm:$0xff]
    %v294 = vld [vmem:[%s281 + $0x60] sm:$0xff]
    %v295 = vld [vmem:[%s281 + $0x68] sm:$0xff]
    %v296 = vld [vmem:[%s281 + $0x70] sm:$0xff]
    %v297 = vld [vmem:[%s281 + $0x78] sm:$0xff]
    %s298 = scalar_lea.vmem %s4, 5
    %v299 = vld [vmem:[%s298] sm:$0x1]
    %v301 = vperm.slane %v299, 0
    %303 = vmatpush.msra.mxu0 %v297
    %304 = vmatpush.msra.mxu0 %v296
    %305 = vmatpush.msra.mxu0 %v295
    %306 = vmatpush.msra.mxu0 %v294
    %307 = vmatpush.msra.mxu0 %v293
    %308 = vmatpush.msra.mxu0 %v292
    %309 = vmatpush.msra.mxu0 %v291
    %310 = vmatpush.msra.mxu0 %v290
    %311 = vmatpush.msra.mxu0 %v289
    %312 = vmatpush.msra.mxu0 %v288
    %313 = vmatpush.msra.mxu0 %v287
    %314 = vmatpush.msra.mxu0 %v286
    %315 = vmatpush.msra.mxu0 %v285
    %316 = vmatpush.msra.mxu0 %v284
    %317 = vmatpush.msra.mxu0 %v283
    %318 = vmatpush.msra.mxu0 %v282
    %319 = vmatmul.f32.gmra.mxu0 %v280
    %v320 = vpop.f32.mrf.mxu0
    %v321 = vadd.f32 %v301, %v320
    %322 = vdwg.mxu0
    %v323 = vmax.f32 %v321, 0.0
    %s324 = scalar_lea.vmem [#allocation2], 768
    %v325 = vld [vmem:[%s324] sm:$0xff]
    %v326 = vld [vmem:[%s324 + $0x8] sm:$0xff]
    %v327 = vld [vmem:[%s324 + $0x10] sm:$0xff]
    %v328 = vld [vmem:[%s324 + $0x18] sm:$0xff]
    %v329 = vld [vmem:[%s324 + $0x20] sm:$0xff]
    %v330 = vld [vmem:[%s324 + $0x28] sm:$0xff]
    %v331 = vld [vmem:[%s324 + $0x30] sm:$0xff]
    %v332 = vld [vmem:[%s324 + $0x38] sm:$0xff]
    %v333 = vld [vmem:[%s324 + $0x40] sm:$0xff]
    %v334 = vld [vmem:[%s324 + $0x48] sm:$0xff]
    %v335 = vld [vmem:[%s324 + $0x50] sm:$0xff]
    %v336 = vld [vmem:[%s324 + $0x58] sm:$0xff]
    %v337 = vld [vmem:[%s324 + $0x60] sm:$0xff]
    %v338 = vld [vmem:[%s324 + $0x68] sm:$0xff]
    %v339 = vld [vmem:[%s324 + $0x70] sm:$0xff]
    %v340 = vld [vmem:[%s324 + $0x78] sm:$0xff]
    %s341 = scalar_lea.vmem %s4, 6
    %v342 = vld [vmem:[%s341] sm:$0x1]
    %v344 = vperm.slane %v342, 0
    %346 = vmatpush.msra.mxu0 %v340
    %347 = vmatpush.msra.mxu0 %v339
    %348 = vmatpush.msra.mxu0 %v338
    %349 = vmatpush.msra.mxu0 %v337
    %350 = vmatpush.msra.mxu0 %v336
    %351 = vmatpush.msra.mxu0 %v335
    %352 = vmatpush.msra.mxu0 %v334
    %353 = vmatpush.msra.mxu0 %v333
    %354 = vmatpush.msra.mxu0 %v332
    %355 = vmatpush.msra.mxu0 %v331
    %356 = vmatpush.msra.mxu0 %v330
    %357 = vmatpush.msra.mxu0 %v329
    %358 = vmatpush.msra.mxu0 %v328
    %359 = vmatpush.msra.mxu0 %v327
    %360 = vmatpush.msra.mxu0 %v326
    %361 = vmatpush.msra.mxu0 %v325
    %362 = vmatmul.f32.gmra.mxu0 %v323
    %v363 = vpop.f32.mrf.mxu0
    %v364 = vadd.f32 %v344, %v363
    %365 = vdwg.mxu0
    %367 = vrot.lane.b32.xlu0 %v364, 127
    %v368 = vpop.permute.xlu0 %367
    %v370 = vsub.f32 %v364, %v368
    %v371 = vsub.f32 0.0, %v370
    %v372 = vmul.f32 %v371, 1.442695
    %v373 = vpow.pop %v372
    %v374 = vadd.f32 %v373, 1.0
    %v375 = vrcp.pop %v374
    %v376 = vmul.f32 %v374, %v375
    %v377 = vsub.f32 1.0, %v376
    %v378 = vmul.f32 %v375, %v377
    %v379 = vadd.f32 %v375, %v378
    %vm380 = vweird.f32 %v374
    %vm381 = vweird.f32 %v375
    %vm382 = vmor %vm380, %vm381
    %v383 = vsel %vm382, %v375, %v379
    %v384 = vand.u32 2147483647, %v374
    %vm385 = vcmp.eq.f32.partialorder %v384, 8.507059e+37
    %v386 = vand.u32 %v374, 2147483648
    %v387 = vor.u32 1.1754944e-38, %v386
    %v388 = vsel %vm385, %v387, %v383
    %v389 = vmul.f32 1.0, %v388
    %v390 = vlaneseq
    %v391 = vand.u32 %v390, 127
    %vm392 = vcmp.eq.s32.totalorder %v391, 0
    %v393 = vsub.f32 1.0, %v389
    %395 = vset.pattern.permute.xlu0 0
    %396 = vperm.xlu0 %395, %v389
    %v397 = vpop.permute.xlu0 %396
    %400 = vset.pattern.permute.xlu0 0
    %401 = vperm.xlu0 %400, %v393
    %v402 = vpop.permute.xlu0 %401
    %v404 = vsel %vm392, %v397, %v402
    %vm405 = vcmask 15360
    %406 = vst.msk [vmem:[%s5] sm:$0xff] %vm405, %v404
    // Predicated region
    $region26: #{mymodule12_forward.1} parent=1 // pred_check
      _
    $region27: #{mymodule12_forward.1} parent=1 // pred_check_branch
      %408 = sbr.rel (0) target = $region29
    $region28: #{mymodule12_forward.1} parent=1 // pred_region
      _
    $region29: #{mymodule12_forward.1} parent=1 // pred_fallthru
      _
    // Predicated region
    $region30: #{mymodule12_forward.1} parent=1 // pred_check
      _
    $region31: #{mymodule12_forward.1} parent=1 // pred_check_branch
      %410 = sbr.rel (0) target = $region33
    $region32: #{mymodule12_forward.1} parent=1 // pred_region
      _
    $region33: #{mymodule12_forward.1} parent=1 // pred_fallthru
      _
    %411 = vsyncpa [#allocation3], 1

</llo_original>
